<compile_context>
chip_gen: v5e
topology: v5e:2x2
jax: 0.10.0
libtpu: 0.0.40
codegen_flags: <defaults>
</compile_context>

<pallas_src>
import jax
import jax.numpy as jnp
import numpy as np
from jax.experimental import pallas as pl
from jax.experimental.pallas import tpu as pltpu


def _embed_kernel(num_ref, ids_ref, taug_ref, out_ref):
    """One grid step == TB batch rows.

    num_ref  : (TB, 1)        f32   VMEM -- "numbers" input
    ids_ref  : (TB, S)        int32 VMEM -- token ids
    taug_ref : (V+2, E)       f32   VMEM -- [embedding table; Linear weight row; Linear bias row]
    out_ref  : (TB*(S+1), E)  f32   VMEM -- flat output slab (row b*(S+1) is the number row)
    """
    tb, s = ids_ref.shape
    vp2, _ = taug_ref.shape
    v = vp2 - 2
    s1 = s + 1

    # Augmented-table row picked by each (batch, position):
    #   position 0    -> row V+1 (Linear bias)
    #   position p>=1 -> row ids[b, p-1] (embedding gather; table[pad] returned as-is)
    ids_aug = jnp.concatenate(
        [jnp.full((tb, 1), v + 1, dtype=ids_ref.dtype), ids_ref[...]], axis=1)   # (TB, S+1)
    # numbers value, applied to column V (Linear weight row) at position 0 only.
    num_aug = jnp.concatenate(
        [num_ref[...].astype(jnp.float32), jnp.zeros((tb, s), jnp.float32)],
        axis=1)                                                                   # (TB, S+1)

    col = jax.lax.broadcasted_iota(jnp.int32, (tb, s1, vp2), 2)
    aug = (col == ids_aug[:, :, None]).astype(jnp.float32)          # gather + bias one-hot
    aug = aug + jnp.where(col == v, num_aug[:, :, None], 0.0)       # numbers * W^T row
    aug = aug.reshape(tb * s1, vp2).astype(taug_ref.dtype)

    out_ref[...] = jnp.dot(
        aug, taug_ref[...],
        precision=jax.lax.Precision.HIGHEST,          # exact f32 gather on the MXU
        preferred_element_type=jnp.float32,
    ).astype(out_ref.dtype)


def _round_up(x, m):
    return ((x + m - 1) // m) * m


def alternate_number_word_embedding(numbers, ids, table, w_t, bias, *, rows_per_block=128):
    """numbers: (B, 1) f32, ids: (B, S) int, table: (V, E), w_t: (1, E), bias: (1, E)."""
    B, S = ids.shape
    V, E = table.shape
    numbers = numbers.astype(jnp.float32)
    ids = ids.astype(jnp.int32)

    # Augmented table so a single matmul serves both the word gather and Linear(1, E).
    table_aug = jnp.concatenate(
        [table,
         w_t.reshape(1, E).astype(table.dtype),
         bias.reshape(1, E).astype(table.dtype)],
        axis=0)                                                      # (V+2, E)

    # ---- batch tile selection ------------------------------------------------
    if B <= 8:
        TB = B                                     # single step; block == full batch dim
    else:
        # Big slab per step (amortize per-step overhead) but keep >= 2 grid steps so
        # the "parallel" axis can shard over both TensorCores on v7x.
        TB = min(max(_round_up(rows_per_block, 8), 8),
                 _round_up(pl.cdiv(B, 2), 8))
        TB = max(TB, 8)
        for cand in range(TB, 7, -8):              # prefer TB | B: no padded tail work
            if B % cand == 0:
                TB = cand
                break
    grid = (pl.cdiv(B, TB),)

    # ---- VMEM budget (generation-aware cap) -----------------------------------
    itemsize = jnp.dtype(table.dtype).itemsize
    block_out = TB * (S + 1) * E * itemsize
    est = (2 * (V + 2) * E * itemsize              # augmented table (double-buffered)
           + 2 * (TB * S + TB) * 4                 # ids + numbers blocks
           + 2 * block_out                         # output block (double-buffered)
           + TB * (S + 1) * (3 * (V + 2) + E) * 4)  # in-kernel one-hot + matmul result
    compiler_kwargs = dict(dimension_semantics=("parallel",))
    if est > 16 * 1024 * 1024:                     # only raise above the conservative default
        try:
            phys_vmem = pltpu.get_tpu_info().vmem_capacity_bytes
        except Exception:
            phys_vmem = 64 * 1024 * 1024           # conservative fallback (v7x per-TC VMEM)
        compiler_kwargs["vmem_limit_bytes"] = min(int(est * 1.25), int(phys_vmem * 0.8))

    out_flat = pl.pallas_call(
        _embed_kernel,
        out_shape=jax.ShapeDtypeStruct((B * (S + 1), E), table.dtype),
        grid=grid,
        in_specs=[
            pl.BlockSpec((TB, 1), lambda i: (i, 0)),           # numbers
            pl.BlockSpec((TB, S), lambda i: (i, 0)),           # token ids
            pl.BlockSpec((V + 2, E), lambda i: (0, 0)),        # augmented table (loop-invariant)
        ],
        out_specs=pl.BlockSpec((TB * (S + 1), E), lambda i: (i, 0)),
        compiler_params=pltpu.CompilerParams(**compiler_kwargs),
    )(numbers, ids, table_aug)

    # Row-major (B*(S+1), E) and (B, S+1, E) share the same layout: free reshape.
    return out_flat.reshape(B, S + 1, E)


if __name__ == "__main__":
    def reference(numbers, ids, table, w_t, bias):
        num_emb = numbers * w_t + bias                    # Linear(1, E): K=1, exact elementwise
        word_emb = table[ids]                             # forward returns table[pad] as-is
        return jnp.concatenate([num_emb[:, None, :], word_emb], axis=1)

    # Small config consistent with the module: n_embd=128, src_vocab_size=32, src_pad_idx=0.
    B, S, E, V, PAD = 2, 8, 128, 32, 0
    key = jax.random.PRNGKey(0)
    k1, k2, k3, k4, k5, k6, k7 = jax.random.split(key, 7)

    numbers = jax.random.normal(k1, (B, 1), dtype=jnp.float32)
    ids = jax.random.randint(k2, (B, S), 0, V, dtype=jnp.int32).at[0, 3].set(PAD)

    # Deterministic synthetic params; nn.Embedding zeroes the padding row at init.
    table = (jax.random.normal(k3, (V, E), dtype=jnp.float32) * 0.02).at[PAD].set(0.0)
    w_t = jax.random.normal(k4, (1, E), dtype=jnp.float32) * 0.02    # Linear(1, E).weight.T
    bias = jax.random.normal(k5, (1, E), dtype=jnp.float32) * 0.02   # Linear(1, E).bias

    out = jax.block_until_ready(
        alternate_number_word_embedding(numbers, ids, table, w_t, bias))
    ref = reference(numbers, ids, table, w_t, bias)
    np.testing.assert_allclose(np.asarray(out), np.asarray(ref), rtol=1e-5, atol=1e-5)

    # Multi-step grid path (TB=8, grid=(2,)) to exercise the tiled "parallel" batch axis.
    B2 = 16
    numbers2 = jax.random.normal(k6, (B2, 1), dtype=jnp.float32)
    ids2 = jax.random.randint(k7, (B2, S), 0, V, dtype=jnp.int32)
    out2 = jax.block_until_ready(
        alternate_number_word_embedding(numbers2, ids2, table, w_t, bias, rows_per_block=8))
    ref2 = reference(numbers2, ids2, table, w_t, bias)
    np.testing.assert_allclose(np.asarray(out2), np.asarray(ref2), rtol=1e-5, atol=1e-5)

    print("KERNEL_OK")
</pallas_src>

<mosaic_0001>
module attributes {stable_mosaic.version = 11 : i64} {
  func.func @_embed_kernel(%arg0: i32, %arg1: memref<2x1xf32, #tpu.memory_space<vmem>>, %arg2: memref<2x8xi32, #tpu.memory_space<vmem>>, %arg3: memref<34x128xf32, #tpu.memory_space<vmem>>, %arg4: memref<18x128xf32, #tpu.memory_space<vmem>>) attributes {dimension_semantics = [#tpu.dimension_semantics<parallel>], iteration_bounds = array<i64: 1>, scalar_prefetch = 0 : i64, scratch_operands = 0 : i64, tpu.core_type = #tpu.core_type<tc>, window_params = [{transform_indices = @transform_0, window_bounds = array<i64: 2, 1>}, {transform_indices = @transform_1, window_bounds = array<i64: 2, 8>}, {pipeline_mode = #tpu.pipeline_mode<synchronous>, transform_indices = @transform_2, window_bounds = array<i64: 34, 128>}, {transform_indices = @transform_3, window_bounds = array<i64: 18, 128>}]} {
    %c33_i32 = arith.constant 33 : i32
    %0 = vector.broadcast %c33_i32 : i32 to vector<2x1xi32>
    %c0 = arith.constant 0 : index
    %c0_0 = arith.constant 0 : index
    %1 = vector.load %arg2[%c0, %c0_0] : memref<2x8xi32, #tpu.memory_space<vmem>>, vector<2x8xi32>
    %2 = tpu.concatenate %0, %1 in 1 : vector<2x1xi32>, vector<2x8xi32> -> vector<2x9xi32>
    %c0_1 = arith.constant 0 : index
    %c0_2 = arith.constant 0 : index
    %3 = vector.load %arg1[%c0_1, %c0_2] : memref<2x1xf32, #tpu.memory_space<vmem>>, vector<2x1xf32>
    %cst = arith.constant 0.000000e+00 : f32
    %4 = vector.broadcast %cst : f32 to vector<2x8xf32>
    %5 = tpu.concatenate %3, %4 in 1 : vector<2x1xf32>, vector<2x8xf32> -> vector<2x9xf32>
    %6 = tpu.iota {dimensions = array<i32: 2>} : vector<2x9x34xi32>
    %7 = vector.shape_cast %2 : vector<2x9xi32> to vector<2x9x1xi32>
    %8 = vector.broadcast %7 : vector<2x9x1xi32> to vector<2x9x34xi32>
    %9 = arith.cmpi eq, %6, %8 : vector<2x9x34xi32>
    %10 = arith.extui %9 : vector<2x9x34xi1> to vector<2x9x34xi32>
    %11 = arith.sitofp %10 : vector<2x9x34xi32> to vector<2x9x34xf32>
    %c32_i32 = arith.constant 32 : i32
    %12 = vector.broadcast %c32_i32 : i32 to vector<2x9x34xi32>
    %13 = arith.cmpi eq, %6, %12 : vector<2x9x34xi32>
    %14 = vector.shape_cast %5 : vector<2x9xf32> to vector<2x9x1xf32>
    %cst_3 = arith.constant 0.000000e+00 : f32
    %15 = vector.shape_cast %14 : vector<2x9x1xf32> to vector<2x9x1xf32>
    %16 = vector.broadcast %15 : vector<2x9x1xf32> to vector<2x9x34xf32>
    %17 = vector.broadcast %cst_3 : f32 to vector<2x9x34xf32>
    %18 = arith.select %13, %16, %17 : vector<2x9x34xi1>, vector<2x9x34xf32>
    %19 = arith.addf %11, %18 : vector<2x9x34xf32>
    %20 = vector.shape_cast %19 : vector<2x9x34xf32> to vector<18x34xf32>
    %c0_4 = arith.constant 0 : index
    %c0_5 = arith.constant 0 : index
    %21 = vector.load %arg3[%c0_4, %c0_5] : memref<34x128xf32, #tpu.memory_space<vmem>>, vector<34x128xf32>
    %cst_6 = arith.constant dense<0.000000e+00> : vector<18x128xf32>
    %22 = tpu.matmul %20, %21, %cst_6 {dimension_numbers = #tpu.dot_dimension_numbers<[1], [0], [0], [1], [0, 0, 1, 1], [], []>, precision = #tpu.contract_precision<fp32>} : vector<18x34xf32>, vector<34x128xf32>, vector<18x128xf32> -> vector<18x128xf32>
    %c0_7 = arith.constant 0 : index
    %c0_8 = arith.constant 0 : index
    %23 = vector.load %arg4[%c0_7, %c0_8] : memref<18x128xf32, #tpu.memory_space<vmem>>, vector<18x128xf32>
    tpu.vector_store %arg4[%c0_7, %c0_8], %22 {strides = array<i32>} : memref<18x128xf32, #tpu.memory_space<vmem>>, vector<18x128xf32>,
    return
  }
  func.func @transform_0(%arg0: i32) -> (i32, i32) {
    %c0_i32 = arith.constant 0 : i32
    %c0_i32_0 = arith.constant 0 : i32
    return %arg0, %c0_i32 : i32, i32
  }
  func.func @transform_1(%arg0: i32) -> (i32, i32) {
    %c0_i32 = arith.constant 0 : i32
    %c0_i32_0 = arith.constant 0 : i32
    return %arg0, %c0_i32 : i32, i32
  }
  func.func @transform_2(%arg0: i32) -> (i32, i32) {
    %c0_i32 = arith.constant 0 : i32
    %c0_i32_0 = arith.constant 0 : i32
    %c0_i32_1 = arith.constant 0 : i32
    return %c0_i32, %c0_i32_0 : i32, i32
  }
  func.func @transform_3(%arg0: i32) -> (i32, i32) {
    %c0_i32 = arith.constant 0 : i32
    %c0_i32_0 = arith.constant 0 : i32
    return %arg0, %c0_i32 : i32, i32
  }
}

</mosaic_0001>

<llo_original>
// kernel: tpu_custom_call.1
$region0: #{tpu_custom_call.1}
  #allocation0 [shape = 'u32[]', space=smem, size = 0x4, offset = 0x4, fixed_abs, tag = 'smem constant byte address 0x4 - core index']
  #allocation1 [shape = 'u32[72,128]{1,0:T(1,128)}', space=vmem, size = 0x9000, scoped, tag = 'internal scratch']
  %s0 = inlined_call_operand.vmem [shape: f32[2,1], index: 0, kind: input, shape index: {}]
  %s1 = inlined_call_operand.vmem [shape: s32[2,8], index: 1, kind: input, shape index: {}]
  %s2 = inlined_call_operand.hbm [shape: f32[34,128], index: 2, kind: input, shape index: {}]
  %s3 = inlined_call_operand.hbm [shape: f32[18,128], index: 3, kind: output, shape index: {}]
  %s4 = sld [smem:[#allocation0]]
  $region26: #{tpu_custom_call.1} parent=0
    _
  %s6 = ssub.s32 1, %s4
  %s7 = scalar_select 0, %s6, %s4
  $region1: #{tpu_custom_call.1} parent=0
    #allocation2 [shape = 'u8[20480]{0}', space=vmem, size = 0x5000, scoped, tag = 'input window, operand 2, single buffered']
    #allocation3 [shape = 's32[1]{0}', space=sflag, size = 0x4, scoped, tag = 'scoped memory for tpu_custom_call.1']
    #allocation4 [shape = 's32[1]{0}', space=sflag, size = 0x4, scoped, tag = 'scoped memory for tpu_custom_call.1']
    #allocation5 [shape = 'u8[12288]{0}', space=vmem, size = 0x3000, scoped, tag = 'output window, operand 0, single buffered']
    %8 = vsyncpa [#allocation3], 0
    %9 = vsyncpa [#allocation4], 0
    // Predicated region
    $region2: #{tpu_custom_call.1} parent=1 // pred_check
      _
    $region3: #{tpu_custom_call.1} parent=1 // pred_check_branch
      %11 = sbr.rel (0) target = $region5
    $region4: #{tpu_custom_call.1} parent=1 // pred_region
      _
    $region5: #{tpu_custom_call.1} parent=1 // pred_fallthru
      _
    // Predicated region
    $region6: #{tpu_custom_call.1} parent=1 // pred_check
      _
    $region7: #{tpu_custom_call.1} parent=1 // pred_check_branch
      %13 = sbr.rel (0) target = $region9
    $region8: #{tpu_custom_call.1} parent=1 // pred_region
      _
    $region9: #{tpu_custom_call.1} parent=1 // pred_fallthru
      _
    // Predicated region
    $region10: #{tpu_custom_call.1} parent=1 // pred_check
      _
    $region11: #{tpu_custom_call.1} parent=1 // pred_check_branch
      %15 = sbr.rel (0) target = $region13
    $region12: #{tpu_custom_call.1} parent=1 // pred_region
      %17 = vsyncadd [#allocation3], 0
      %s18 = sshll.u32 %s2, 4
      %s19 = int_to_ptr.hbm [resolvable:$true] %s18
      %s20 = sshll.u32 [#allocation2], 4
      %s21 = int_to_ptr.vmem [resolvable:$true] %s20
      %26 = dma.hbm_to_vmem [thread:$0]  %s19, 640, %s21, [#allocation3], 128, 128, 8
    $region13: #{tpu_custom_call.1} parent=1 // pred_fallthru
      _
    // Predicated region
    $region14: #{tpu_custom_call.1} parent=1 // pred_check
      _
    $region15: #{tpu_custom_call.1} parent=1 // pred_check_branch
      %28 = sbr.rel (0) target = $region17
    $region16: #{tpu_custom_call.1} parent=1 // pred_region
      %30 = dma.done [#allocation3], 640
    $region17: #{tpu_custom_call.1} parent=1 // pred_fallthru
      _
    %v31 = vld [vmem:[%s1] sm:$0x3]
    %32 = vrot.lane.b32.xlu0 %v31, 1
    %v33 = vpop.permute.xlu0 %32
    %vm34 = vcmask 7168
    %v35 = vsel %vm34, 33, %v33
    %v36 = vld [vmem:[%s0] sm:$0x3]
    %v37 = vsel %vm34, %v36, 0.0
    %v38 = vlaneseq
    %v39 = vand.u32 %v38, 127
    %v40 = vperm.slane %v35, 0
    %v41 = vlaneseq
    %v42 = vshrl.u32 %v41, 7
    %44 = vset.pattern.permute.xlu0 %v42
    %45 = vperm.xlu0 %44, %v40
    %v46 = vpop.permute.xlu0 %45
    %v47 = vlaneseq
    %v48 = vshrl.u32 %v47, 7
    %v49 = vadd.s32 %v48, 8
    %50 = vset.pattern.permute.xlu0 %v49
    %51 = vperm.xlu0 %50, %v40
    %v52 = vpop.permute.xlu0 %51
    %v53 = vperm.slane %v35, 1
    %v54 = vlaneseq
    %v55 = vshrl.u32 %v54, 7
    %57 = vset.pattern.permute.xlu0 %v55
    %58 = vperm.xlu0 %57, %v53
    %v59 = vpop.permute.xlu0 %58
    %v60 = vlaneseq
    %v61 = vshrl.u32 %v60, 7
    %v62 = vadd.s32 %v61, 8
    %63 = vset.pattern.permute.xlu0 %v62
    %64 = vperm.xlu0 %63, %v53
    %v65 = vpop.permute.xlu0 %64
    %vm66 = vcmp.eq.s32.totalorder %v39, %v46
    %vm67 = vcmp.eq.s32.totalorder %v39, %v52
    %vm68 = vcmp.eq.s32.totalorder %v39, %v59
    %vm69 = vcmp.eq.s32.totalorder %v39, %v65
    %v70 = vsel %vm66, 1, 0
    %v71 = vsel %vm67, 1, 0
    %v72 = vsel %vm68, 1, 0
    %v73 = vsel %vm69, 1, 0
    %v74 = vcvt.s32.f32 %v70
    %v75 = vcvt.s32.f32 %v71
    %v76 = vcvt.s32.f32 %v72
    %v77 = vcvt.s32.f32 %v73
    %vm78 = vcmp.eq.s32.totalorder %v39, 32
    %v79 = vperm.slane %v37, 0
    %v80 = vlaneseq
    %v81 = vshrl.u32 %v80, 7
    %83 = vset.pattern.permute.xlu0 %v81
    %84 = vperm.xlu0 %83, %v79
    %v85 = vpop.permute.xlu0 %84
    %v86 = vlaneseq
    %v87 = vshrl.u32 %v86, 7
    %v88 = vadd.s32 %v87, 8
    %89 = vset.pattern.permute.xlu0 %v88
    %90 = vperm.xlu0 %89, %v79
    %v91 = vpop.permute.xlu0 %90
    %v92 = vperm.slane %v37, 1
    %v93 = vlaneseq
    %v94 = vshrl.u32 %v93, 7
    %96 = vset.pattern.permute.xlu0 %v94
    %97 = vperm.xlu0 %96, %v92
    %v98 = vpop.permute.xlu0 %97
    %v99 = vlaneseq
    %v100 = vshrl.u32 %v99, 7
    %v101 = vadd.s32 %v100, 8
    %102 = vset.pattern.permute.xlu0 %v101
    %103 = vperm.xlu0 %102, %v92
    %v104 = vpop.permute.xlu0 %103
    %v105 = vsel %vm78, %v85, 0.0
    %v106 = vsel %vm78, %v91, 0.0
    %v107 = vsel %vm78, %v98, 0.0
    %v108 = vsel %vm78, %v104, 0.0
    %v109 = vadd.f32 %v74, %v105
    %v110 = vadd.f32 %v75, %v106
    %v111 = vadd.f32 %v76, %v107
    %v112 = vadd.f32 %v77, %v108
    %v117 = vrot.slane %v109, 1
    %v118 = vrot.slane %v109, 2
    %v119 = vrot.slane %v109, 3
    %v120 = vrot.slane %v109, 4
    %v121 = vrot.slane %v109, 5
    %v122 = vrot.slane %v109, 6
    %v123 = vrot.slane %v109, 7
    %v124 = vrot.slane %v111, 1
    %v125 = vrot.slane %v111, 2
    %v126 = vrot.slane %v111, 3
    %v127 = vrot.slane %v111, 4
    %v128 = vrot.slane %v111, 5
    %v129 = vrot.slane %v111, 6
    %v130 = vrot.slane %v111, 7
    %v131 = vld [vmem:[#allocation2] sm:$0xff]
    %v132 = vld [vmem:[#allocation2 + $0x8] sm:$0xff]
    %v133 = vld [vmem:[#allocation2 + $0x10] sm:$0xff]
    %v134 = vld [vmem:[#allocation2 + $0x18] sm:$0xff]
    %v135 = vld [vmem:[#allocation2 + $0x20] sm:$0x3]
    %136 = vst [vmem:[#allocation1] ss:$9 sm:$0xff] %v109
    %s137 = scalar_lea.vmem [#allocation1], 1
    %138 = vst [vmem:[%s137] ss:$9 sm:$0xff] %v117
    %s139 = scalar_lea.vmem [#allocation1], 2
    %140 = vst [vmem:[%s139] ss:$9 sm:$0xff] %v118
    %s141 = scalar_lea.vmem [#allocation1], 3
    %142 = vst [vmem:[%s141] ss:$9 sm:$0xff] %v119
    %s143 = scalar_lea.vmem [#allocation1], 4
    %144 = vst [vmem:[%s143] ss:$9 sm:$0xff] %v120
    %s145 = scalar_lea.vmem [#allocation1], 5
    %146 = vst [vmem:[%s145] ss:$9 sm:$0xff] %v121
    %s147 = scalar_lea.vmem [#allocation1], 6
    %148 = vst [vmem:[%s147] ss:$9 sm:$0xff] %v122
    %s149 = scalar_lea.vmem [#allocation1], 7
    %150 = vst [vmem:[%s149] ss:$9 sm:$0xff] %v123
    %v151 = vld [vmem:[#allocation1] sm:$0xff]
    %152 = vst [vmem:[#allocation1] ss:$9 sm:$0xff] %v110
    %153 = vst [vmem:[%s137] ss:$9 sm:$0xff] %v111
    %154 = vst [vmem:[%s139] ss:$9 sm:$0xff] %v124
    %155 = vst [vmem:[%s141] ss:$9 sm:$0xff] %v125
    %156 = vst [vmem:[%s143] ss:$9 sm:$0xff] %v126
    %157 = vst [vmem:[%s145] ss:$9 sm:$0xff] %v127
    %158 = vst [vmem:[%s147] ss:$9 sm:$0xff] %v128
    %159 = vst [vmem:[%s149] ss:$9 sm:$0xff] %v129
    %v160 = vld [vmem:[#allocation1] sm:$0xff]
    %161 = vst [vmem:[#allocation1] ss:$9 sm:$0xff] %v130
    %162 = vst [vmem:[%s137] ss:$9 sm:$0xff] %v112
    %v163 = vld [vmem:[#allocation1] sm:$0xff]
    %vm164 = vcmask 277504
    %v165 = vsel %vm164, %v151, 0
    %v167 = vsel %vm164, %v160, 0
    %v169 = vsel %vm164, %v163, 0
    %vm171 = vcmask 1041408
    %v173 = vsel %vm171, %v135, 0
    %175 = vmatpush.msra.mxu0 0.0
    %176 = vmatpush.msra.mxu0 0.0
    %177 = vmatpush.msra.mxu0 0.0
    %178 = vmatpush.msra.mxu0 0.0
    %179 = vmatpush.msra.mxu0 0.0
    %180 = vmatpush.msra.mxu0 0.0
    %181 = vmatpush.msra.mxu0 0.0
    %182 = vmatpush.msra.mxu0 0.0
    %183 = vmatpush.msra.mxu0 0.0
    %184 = vmatpush.msra.mxu0 0.0
    %185 = vmatpush.msra.mxu0 0.0
    %v186 = vand.u32 %v173, 4294901760
    %187 = vmatpush.msra.mxu0 %v186
    %v188 = vand.u32 %v134, 4294901760
    %189 = vmatpush.msra.mxu0 %v188
    %v190 = vand.u32 %v133, 4294901760
    %191 = vmatpush.msra.mxu0 %v190
    %v192 = vand.u32 %v132, 4294901760
    %193 = vmatpush.msra.mxu0 %v192
    %v194 = vand.u32 %v131, 4294901760
    %195 = vmatpush.msra.mxu0 %v194
    %v196 = vand.u32 %v165, 4294901760
    %v197 = vsub.f32 %v165, %v196
    %v198 = vand.u32 %v197, 4294901760
    %v199 = vsub.f32 %v197, %v198
    %v200 = vand.u32 %v199, 4294901760
    %201 = vmatmul.f32.gmra.mxu0 %v200
    %v202 = vpop.f32.mrf.mxu0
    %v203 = vadd.f32 0.0, %v202
    %v204 = vand.u32 %v167, 4294901760
    %v205 = vsub.f32 %v167, %v204
    %v206 = vand.u32 %v205, 4294901760
    %v207 = vsub.f32 %v205, %v206
    %v208 = vand.u32 %v207, 4294901760
    %209 = vmatmul.f32.gmra.mxu0 %v208
    %v210 = vpop.f32.mrf.mxu0
    %v211 = vadd.f32 0.0, %v210
    %v212 = vand.u32 %v169, 4294901760
    %v213 = vsub.f32 %v169, %v212
    %v214 = vand.u32 %v213, 4294901760
    %v215 = vsub.f32 %v213, %v214
    %v216 = vand.u32 %v215, 4294901760
    %217 = vmatmul.f32.gmra.mxu0 %v216
    %v218 = vpop.f32.mrf.mxu0
    %v219 = vadd.f32 0.0, %v218
    %220 = vdwg.mxu0
    %221 = vmatpush.msra.mxu0 0.0
    %222 = vmatpush.msra.mxu0 0.0
    %223 = vmatpush.msra.mxu0 0.0
    %224 = vmatpush.msra.mxu0 0.0
    %225 = vmatpush.msra.mxu0 0.0
    %226 = vmatpush.msra.mxu0 0.0
    %227 = vmatpush.msra.mxu0 0.0
    %228 = vmatpush.msra.mxu0 0.0
    %229 = vmatpush.msra.mxu0 0.0
    %230 = vmatpush.msra.mxu0 0.0
    %231 = vmatpush.msra.mxu0 0.0
    %v232 = vand.u32 %v173, 4294901760
    %v233 = vsub.f32 %v173, %v232
    %v234 = vand.u32 %v233, 4294901760
    %v235 = vsub.f32 %v233, %v234
    %v236 = vand.u32 %v235, 4294901760
    %237 = vmatpush.msra.mxu0 %v236
    %v238 = vand.u32 %v134, 4294901760
    %v239 = vsub.f32 %v134, %v238
    %v240 = vand.u32 %v239, 4294901760
    %v241 = vsub.f32 %v239, %v240
    %v242 = vand.u32 %v241, 4294901760
    %243 = vmatpush.msra.mxu0 %v242
    %v244 = vand.u32 %v133, 4294901760
    %v245 = vsub.f32 %v133, %v244
    %v246 = vand.u32 %v245, 4294901760
    %v247 = vsub.f32 %v245, %v246
    %v248 = vand.u32 %v247, 4294901760
    %249 = vmatpush.msra.mxu0 %v248
    %v250 = vand.u32 %v132, 4294901760
    %v251 = vsub.f32 %v132, %v250
    %v252 = vand.u32 %v251, 4294901760
    %v253 = vsub.f32 %v251, %v252
    %v254 = vand.u32 %v253, 4294901760
    %255 = vmatpush.msra.mxu0 %v254
    %v256 = vand.u32 %v131, 4294901760
    %v257 = vsub.f32 %v131, %v256
    %v258 = vand.u32 %v257, 4294901760
    %v259 = vsub.f32 %v257, %v258
    %v260 = vand.u32 %v259, 4294901760
    %261 = vmatpush.msra.mxu0 %v260
    %v262 = vand.u32 %v165, 4294901760
    %263 = vmatmul.f32.gmra.mxu0 %v262
    %v264 = vpop.f32.mrf.mxu0
    %v265 = vadd.f32 %v203, %v264
    %v266 = vand.u32 %v167, 4294901760
    %267 = vmatmul.f32.gmra.mxu0 %v266
    %v268 = vpop.f32.mrf.mxu0
    %v269 = vadd.f32 %v211, %v268
    %v270 = vand.u32 %v169, 4294901760
    %271 = vmatmul.f32.gmra.mxu0 %v270
    %v272 = vpop.f32.mrf.mxu0
    %v273 = vadd.f32 %v219, %v272
    %274 = vdwg.mxu0
    %275 = vmatpush.msra.mxu0 0.0
    %276 = vmatpush.msra.mxu0 0.0
    %277 = vmatpush.msra.mxu0 0.0
    %278 = vmatpush.msra.mxu0 0.0
    %279 = vmatpush.msra.mxu0 0.0
    %280 = vmatpush.msra.mxu0 0.0
    %281 = vmatpush.msra.mxu0 0.0
    %282 = vmatpush.msra.mxu0 0.0
    %283 = vmatpush.msra.mxu0 0.0
    %284 = vmatpush.msra.mxu0 0.0
    %285 = vmatpush.msra.mxu0 0.0
    %v286 = vand.u32 %v173, 4294901760
    %v287 = vsub.f32 %v173, %v286
    %288 = vmatpush.msra.mxu0 %v287
    %v289 = vand.u32 %v134, 4294901760
    %v290 = vsub.f32 %v134, %v289
    %291 = vmatpush.msra.mxu0 %v290
    %v292 = vand.u32 %v133, 4294901760
    %v293 = vsub.f32 %v133, %v292
    %294 = vmatpush.msra.mxu0 %v293
    %v295 = vand.u32 %v132, 4294901760
    %v296 = vsub.f32 %v132, %v295
    %297 = vmatpush.msra.mxu0 %v296
    %v298 = vand.u32 %v131, 4294901760
    %v299 = vsub.f32 %v131, %v298
    %300 = vmatpush.msra.mxu0 %v299
    %v301 = vand.u32 %v165, 4294901760
    %v302 = vsub.f32 %v165, %v301
    %303 = vmatmul.f32.gmra.mxu0 %v302
    %v304 = vpop.f32.mrf.mxu0
    %v305 = vadd.f32 %v265, %v304
    %v306 = vand.u32 %v167, 4294901760
    %v307 = vsub.f32 %v167, %v306
    %308 = vmatmul.f32.gmra.mxu0 %v307
    %v309 = vpop.f32.mrf.mxu0
    %v310 = vadd.f32 %v269, %v309
    %v311 = vand.u32 %v169, 4294901760
    %v312 = vsub.f32 %v169, %v311
    %313 = vmatmul.f32.gmra.mxu0 %v312
    %v314 = vpop.f32.mrf.mxu0
    %v315 = vadd.f32 %v273, %v314
    %316 = vdwg.mxu0
    %317 = vmatpush.msra.mxu0 0.0
    %318 = vmatpush.msra.mxu0 0.0
    %319 = vmatpush.msra.mxu0 0.0
    %320 = vmatpush.msra.mxu0 0.0
    %321 = vmatpush.msra.mxu0 0.0
    %322 = vmatpush.msra.mxu0 0.0
    %323 = vmatpush.msra.mxu0 0.0
    %324 = vmatpush.msra.mxu0 0.0
    %325 = vmatpush.msra.mxu0 0.0
    %326 = vmatpush.msra.mxu0 0.0
    %327 = vmatpush.msra.mxu0 0.0
    %v328 = vand.u32 %v173, 4294901760
    %329 = vmatpush.msra.mxu0 %v328
    %v330 = vand.u32 %v134, 4294901760
    %331 = vmatpush.msra.mxu0 %v330
    %v332 = vand.u32 %v133, 4294901760
    %333 = vmatpush.msra.mxu0 %v332
    %v334 = vand.u32 %v132, 4294901760
    %335 = vmatpush.msra.mxu0 %v334
    %v336 = vand.u32 %v131, 4294901760
    %337 = vmatpush.msra.mxu0 %v336
    %v338 = vand.u32 %v165, 4294901760
    %v339 = vsub.f32 %v165, %v338
    %v340 = vand.u32 %v339, 4294901760
    %341 = vmatmul.f32.gmra.mxu0 %v340
    %v342 = vpop.f32.mrf.mxu0
    %v343 = vadd.f32 %v305, %v342
    %v344 = vand.u32 %v167, 4294901760
    %v345 = vsub.f32 %v167, %v344
    %v346 = vand.u32 %v345, 4294901760
    %347 = vmatmul.f32.gmra.mxu0 %v346
    %v348 = vpop.f32.mrf.mxu0
    %v349 = vadd.f32 %v310, %v348
    %v350 = vand.u32 %v169, 4294901760
    %v351 = vsub.f32 %v169, %v350
    %v352 = vand.u32 %v351, 4294901760
    %353 = vmatmul.f32.gmra.mxu0 %v352
    %v354 = vpop.f32.mrf.mxu0
    %v355 = vadd.f32 %v315, %v354
    %356 = vdwg.mxu0
    %357 = vmatpush.msra.mxu0 0.0
    %358 = vmatpush.msra.mxu0 0.0
    %359 = vmatpush.msra.mxu0 0.0
    %360 = vmatpush.msra.mxu0 0.0
    %361 = vmatpush.msra.mxu0 0.0
    %362 = vmatpush.msra.mxu0 0.0
    %363 = vmatpush.msra.mxu0 0.0
    %364 = vmatpush.msra.mxu0 0.0
    %365 = vmatpush.msra.mxu0 0.0
    %366 = vmatpush.msra.mxu0 0.0
    %367 = vmatpush.msra.mxu0 0.0
    %v368 = vand.u32 %v173, 4294901760
    %v369 = vsub.f32 %v173, %v368
    %v370 = vand.u32 %v369, 4294901760
    %371 = vmatpush.msra.mxu0 %v370
    %v372 = vand.u32 %v134, 4294901760
    %v373 = vsub.f32 %v134, %v372
    %v374 = vand.u32 %v373, 4294901760
    %375 = vmatpush.msra.mxu0 %v374
    %v376 = vand.u32 %v133, 4294901760
    %v377 = vsub.f32 %v133, %v376
    %v378 = vand.u32 %v377, 4294901760
    %379 = vmatpush.msra.mxu0 %v378
    %v380 = vand.u32 %v132, 4294901760
    %v381 = vsub.f32 %v132, %v380
    %v382 = vand.u32 %v381, 4294901760
    %383 = vmatpush.msra.mxu0 %v382
    %v384 = vand.u32 %v131, 4294901760
    %v385 = vsub.f32 %v131, %v384
    %v386 = vand.u32 %v385, 4294901760
    %387 = vmatpush.msra.mxu0 %v386
    %v388 = vand.u32 %v165, 4294901760
    %389 = vmatmul.f32.gmra.mxu0 %v388
    %v390 = vpop.f32.mrf.mxu0
    %v391 = vadd.f32 %v343, %v390
    %v392 = vand.u32 %v167, 4294901760
    %393 = vmatmul.f32.gmra.mxu0 %v392
    %v394 = vpop.f32.mrf.mxu0
    %v395 = vadd.f32 %v349, %v394
    %v396 = vand.u32 %v169, 4294901760
    %397 = vmatmul.f32.gmra.mxu0 %v396
    %v398 = vpop.f32.mrf.mxu0
    %v399 = vadd.f32 %v355, %v398
    %400 = vdwg.mxu0
    %401 = vmatpush.msra.mxu0 0.0
    %402 = vmatpush.msra.mxu0 0.0
    %403 = vmatpush.msra.mxu0 0.0
    %404 = vmatpush.msra.mxu0 0.0
    %405 = vmatpush.msra.mxu0 0.0
    %406 = vmatpush.msra.mxu0 0.0
    %407 = vmatpush.msra.mxu0 0.0
    %408 = vmatpush.msra.mxu0 0.0
    %409 = vmatpush.msra.mxu0 0.0
    %410 = vmatpush.msra.mxu0 0.0
    %411 = vmatpush.msra.mxu0 0.0
    %v412 = vand.u32 %v173, 4294901760
    %413 = vmatpush.msra.mxu0 %v412
    %v414 = vand.u32 %v134, 4294901760
    %415 = vmatpush.msra.mxu0 %v414
    %v416 = vand.u32 %v133, 4294901760
    %417 = vmatpush.msra.mxu0 %v416
    %v418 = vand.u32 %v132, 4294901760
    %419 = vmatpush.msra.mxu0 %v418
    %v420 = vand.u32 %v131, 4294901760
    %421 = vmatpush.msra.mxu0 %v420
    %v422 = vand.u32 %v165, 4294901760
    %423 = vmatmul.f32.gmra.mxu0 %v422
    %v424 = vpop.f32.mrf.mxu0
    %v425 = vadd.f32 %v391, %v424
    %v426 = vand.u32 %v167, 4294901760
    %427 = vmatmul.f32.gmra.mxu0 %v426
    %v428 = vpop.f32.mrf.mxu0
    %v429 = vadd.f32 %v395, %v428
    %v430 = vand.u32 %v169, 4294901760
    %431 = vmatmul.f32.gmra.mxu0 %v430
    %v432 = vpop.f32.mrf.mxu0
    %v433 = vadd.f32 %v399, %v432
    %434 = vdwg.mxu0
    %435 = vst [vmem:[#allocation5] sm:$0xff] %v425
    %436 = vst [vmem:[#allocation5 + $0x8] sm:$0xff] %v429
    %437 = vst [vmem:[#allocation5 + $0x10] sm:$0x3] %v433
    // Predicated region
    $region18: #{tpu_custom_call.1} parent=1 // pred_check
      _
    $region19: #{tpu_custom_call.1} parent=1 // pred_check_branch
      %439 = sbr.rel (0) target = $region21
    $region20: #{tpu_custom_call.1} parent=1 // pred_region
      %441 = vsyncadd [#allocation4], 0
      %s442 = sshll.u32 [#allocation5], 4
      %s443 = int_to_ptr.vmem [resolvable:$true] %s442
      %s444 = sshll.u32 %s3, 4
      %s445 = int_to_ptr.hbm [resolvable:$true] %s444
      %450 = dma.vmem_to_hbm [thread:$0]  %s443, 384, %s445, [#allocation4], 128, 128, 8
    $region21: #{tpu_custom_call.1} parent=1 // pred_fallthru
      _
    // Predicated region
    $region22: #{tpu_custom_call.1} parent=1 // pred_check
      _
    $region23: #{tpu_custom_call.1} parent=1 // pred_check_branch
      %452 = sbr.rel (0) target = $region25
    $region24: #{tpu_custom_call.1} parent=1 // pred_region
      %454 = dma.done [#allocation4], 384
    $region25: #{tpu_custom_call.1} parent=1 // pred_fallthru
      _
    %455 = vsyncpa [#allocation3], 1
    %456 = vsyncpa [#allocation4], 1

</llo_original>
